<compile_context>
chip_gen: v7x
topology: tpu7x:2x2x1
jax: 0.10.0
libtpu: 0.0.40
codegen_flags: <defaults>
</compile_context>

<pallas_src>
import jax
import jax.numpy as jnp
from jax.experimental import pallas as pl
from jax.experimental.pallas import tpu as pltpu


# ----------------------------- Pallas kernel -------------------------------
def lstm_classifier_kernel(
    tokens_ref,    # (S*B, 1)     int32  VMEM (flattened token ids)
    emb_proj_ref,  # (V_pad, 4H)  bf16   VMEM (embedding @ W_ih^T, zero-padded)
    h0_ref,        # (B, H)       f32
    c0_ref,        # (B, H)       f32
    meta_ref,      # (B, F)       f32
    w_hh_t_ref,    # (H, 4H)      bf16   (hidden->gates, transposed)
    b_gates_ref,   # (1, 4H)      f32    (b_ih + b_hh)
    w1_t_ref,      # (H, D)       bf16
    b1_ref,        # (1, D)       f32
    w2a_t_ref,     # (D, O)       bf16   (fc2 slice acting on dense_out)
    w2b_ref,       # (F, O)       f32    (fc2 slice acting on meta, VPU path)
    b2_ref,        # (1, O)       f32
    logps_ref,     # (B, O)       f32    output: log-probabilities
    h_out_ref,     # (B, H)       f32    output: final hidden state
    c_out_ref,     # (B, H)       f32    output: final cell state
):
    SB = tokens_ref.shape[0]
    B, H = h0_ref.shape
    S = SB // B
    V_pad = emb_proj_ref.shape[0]
    F = meta_ref.shape[1]

    # Vectorized one-hot MXU gather of the folded input projection: replaces
    # the previous 16-iteration scalar SMEM/VMEM copy loop with one VPU
    # compare and one tiny bf16 MXU matmul (bias folded in once).
    tok = tokens_ref[...]                                         # (SB, 1) i32
    iota = jax.lax.broadcasted_iota(jnp.int32, (SB, V_pad), 1)    # (SB, V_pad)
    onehot = jnp.where(iota == tok, 1.0, 0.0).astype(jnp.bfloat16)
    x_proj = (
        jnp.dot(onehot, emb_proj_ref[...], preferred_element_type=jnp.float32)
        + b_gates_ref[...]
    )                                                             # (SB, 4H) f32

    w_hh_t = w_hh_t_ref[...]                                      # bf16, resident
    h = h0_ref[...]                                               # f32 state
    c = c0_ref[...]

    # Fully unrolled recurrence (S is static and small): one MXU matmul and
    # three EUP transcendentals per step on the serial critical path.
    # TODO(synk): explicit MXU staging (matmul_push_rhs once + acc_lhs/pop per
    # step) and v7x MRB in-place accumulation would shave a few dependent ops
    # per step; relying on Mosaic scheduling of the resident bf16 RHS for now.
    for t in range(S):
        gates = x_proj[t * B:(t + 1) * B, :] + jnp.dot(
            h.astype(jnp.bfloat16), w_hh_t, preferred_element_type=jnp.float32
        )                                                         # (B, 4H) f32
        # PyTorch gate order: input, forget, cell(g), output.
        sig = jax.nn.sigmoid(gates)         # one sigmoid over the full 4H vreg
        i_g = sig[:, 0 * H:1 * H]
        f_g = sig[:, 1 * H:2 * H]
        o_g = sig[:, 3 * H:4 * H]
        g_g = jnp.tanh(gates[:, 2 * H:3 * H])
        c = f_g * c + i_g * g_g
        # TODO(synk): on v6e/v7x (bf16 VPU) keep h in bf16 between steps to drop
        # one cast per step; f32 state kept here for v5e portability.
        h = o_g * jnp.tanh(c)

    h_out_ref[...] = h
    c_out_ref[...] = c

    # nn.Dropout(0.2) in eval mode is the identity.
    dense = (
        jnp.dot(h.astype(jnp.bfloat16), w1_t_ref[...],
                preferred_element_type=jnp.float32)
        + b1_ref[...]
    )

    # torch.cat((dense, meta), 1) @ W2^T  ==  dense @ W2a^T + meta @ W2b^T.
    # The dense part uses the MXU; the meta part is 64 MACs, done in f32 on
    # the VPU (broadcast mul-add over F) to avoid an MXU push/pop round trip.
    out = (
        jnp.dot(dense.astype(jnp.bfloat16), w2a_t_ref[...],
                preferred_element_type=jnp.float32)
        + b2_ref[...]
    )
    meta = meta_ref[...]
    w2b = w2b_ref[...]
    for f_idx in range(F):
        out = out + meta[:, f_idx:f_idx + 1] * w2b[f_idx:f_idx + 1, :]

    # Stable LogSoftmax over dim 1 (f32).
    m = jnp.max(out, axis=1, keepdims=True)
    lse = m + jnp.log(jnp.sum(jnp.exp(out - m), axis=1, keepdims=True))
    logps_ref[...] = out - lse


# ------------------------------- wrapper ------------------------------------
@jax.jit
def lstm_text_classifier_forward(params, tokens, meta, hidden):
    """tokens: (S, B) int32, meta: (B, F) float32, hidden: (h0, c0) each (L, B, H)."""
    h0, c0 = hidden
    # TODO(synk): only lstm_layers == 1 is implemented in-kernel (module default).
    assert h0.shape[0] == 1 and c0.shape[0] == 1

    S, B = tokens.shape
    V, E = params["embedding"].shape
    H = params["w_hh"].shape[1]
    D = params["w1"].shape[0]
    O = params["w2"].shape[0]

    # Fold embedding table into the input projection once (f32 matmul on
    # weights), pad the vocab axis for a clean MXU contraction, and cast the
    # MXU operands to bf16 (f32 accumulation / bias / state elsewhere).
    emb_proj = params["embedding"].astype(jnp.float32) @ params["w_ih"].T.astype(jnp.float32)
    V_pad = ((V + 63) // 64) * 64
    emb_proj_pad = (
        jnp.zeros((V_pad, 4 * H), jnp.float32).at[:V].set(emb_proj).astype(jnp.bfloat16)
    )                                                                  # (V_pad, 4H)

    w_hh_t = params["w_hh"].T.astype(jnp.bfloat16)                     # (H, 4H)
    b_gates = (params["b_ih"] + params["b_hh"]).reshape(1, 4 * H).astype(jnp.float32)
    w1_t = params["w1"].T.astype(jnp.bfloat16)                         # (H, D)
    b1 = params["b1"].reshape(1, D).astype(jnp.float32)
    w2a_t = params["w2"][:, :D].T.astype(jnp.bfloat16)                 # (D, O)
    w2b = params["w2"][:, D:].T.astype(jnp.float32)                    # (F, O) f32 VPU path
    b2 = params["b2"].reshape(1, O).astype(jnp.float32)

    vmem = pl.BlockSpec(memory_space=pltpu.MemorySpace.VMEM)

    out_shapes = (
        jax.ShapeDtypeStruct((B, O), jnp.float32),
        jax.ShapeDtypeStruct((B, H), jnp.float32),
        jax.ShapeDtypeStruct((B, H), jnp.float32),
    )

    # TODO(synk): at larger batches, pad B up to a full sublane group (>=8) and
    # add a leading "parallel" batch grid axis so both v7x TensorCores are used;
    # at B=2 a single latency-bound invocation is the right call.
    logps, h_out, c_out = pl.pallas_call(
        lstm_classifier_kernel,
        out_shape=out_shapes,
        in_specs=[vmem] * 12,
        out_specs=(vmem, vmem, vmem),
        input_output_aliases={2: 1, 3: 2},   # h0 -> h_out, c0 -> c_out
    )(
        tokens.reshape(S * B, 1).astype(jnp.int32),
        emb_proj_pad,
        h0[0].astype(jnp.float32),
        c0[0].astype(jnp.float32),
        meta.astype(jnp.float32),
        w_hh_t, b_gates, w1_t, b1, w2a_t, w2b, b2,
    )
    return logps, (h_out[None], c_out[None])


# ---------------------------- pure-JAX reference ----------------------------
def reference_forward(params, tokens, meta, hidden):
    h, c = hidden[0][0], hidden[1][0]
    embeds = jnp.take(params["embedding"], tokens, axis=0)
    H = params["w_hh"].shape[1]
    for t in range(embeds.shape[0]):
        gates = (embeds[t] @ params["w_ih"].T + params["b_ih"]
                 + h @ params["w_hh"].T + params["b_hh"])
        i_g = jax.nn.sigmoid(gates[:, 0 * H:1 * H])
        f_g = jax.nn.sigmoid(gates[:, 1 * H:2 * H])
        g_g = jnp.tanh(gates[:, 2 * H:3 * H])
        o_g = jax.nn.sigmoid(gates[:, 3 * H:4 * H])
        c = f_g * c + i_g * g_g
        h = o_g * jnp.tanh(c)
    dense = h @ params["w1"].T + params["b1"]
    concat = jnp.concatenate([dense, meta.astype(jnp.float32)], axis=1)
    out = concat @ params["w2"].T + params["b2"]
    return jax.nn.log_softmax(out, axis=1), (h[None], c[None])


# --------------------------------- main --------------------------------------
if __name__ == "__main__":
    # Module hyperparameters (small, consistent with __init__ shapes)
    vocab_size, embed_size, lstm_size = 50, 32, 32
    dense_size, numeric_feature_size, output_size = 32, 4, 8
    lstm_layers = 1
    seq_len, batch = 8, 2

    key = jax.random.PRNGKey(0)
    ks = jax.random.split(key, 12)
    scale = 0.1
    params = {
        "embedding": scale * jax.random.normal(ks[0], (vocab_size, embed_size), jnp.float32),
        "w_ih": scale * jax.random.normal(ks[1], (4 * lstm_size, embed_size), jnp.float32),
        "w_hh": scale * jax.random.normal(ks[2], (4 * lstm_size, lstm_size), jnp.float32),
        "b_ih": scale * jax.random.normal(ks[3], (4 * lstm_size,), jnp.float32),
        "b_hh": scale * jax.random.normal(ks[4], (4 * lstm_size,), jnp.float32),
        "w1": scale * jax.random.normal(ks[5], (dense_size, lstm_size), jnp.float32),
        "b1": scale * jax.random.normal(ks[6], (dense_size,), jnp.float32),
        "w2": scale * jax.random.normal(ks[7], (output_size, dense_size + numeric_feature_size), jnp.float32),
        "b2": scale * jax.random.normal(ks[8], (output_size,), jnp.float32),
    }

    tokens = jax.random.randint(ks[9], (seq_len, batch), 0, vocab_size, dtype=jnp.int32)
    meta = jax.random.normal(ks[10], (batch, numeric_feature_size), jnp.float32)
    hidden = (
        jnp.zeros((lstm_layers, batch, lstm_size), jnp.float32),
        jnp.zeros((lstm_layers, batch, lstm_size), jnp.float32),
    )

    logps, (h_n, c_n) = lstm_text_classifier_forward(params, tokens, meta, hidden)
    jax.block_until_ready((logps, h_n, c_n))

    ref_logps, (ref_h, ref_c) = reference_forward(params, tokens, meta, hidden)
    # Tolerances loosened vs. pure f32: MXU operands (folded embedding
    # projection, h, dense) are bf16 with f32 accumulation / state math.
    assert jnp.allclose(logps, ref_logps, rtol=2e-2, atol=2e-2)
    assert jnp.allclose(h_n, ref_h, rtol=2e-2, atol=2e-2)
    assert jnp.allclose(c_n, ref_c, rtol=2e-2, atol=2e-2)

    print("KERNEL_OK")
</pallas_src>

<mosaic_0001>
module attributes {stable_mosaic.version = 11 : i64} {
  func.func @lstm_classifier_kernel(%arg0: memref<16x1xi32, #tpu.memory_space<vmem>>, %arg1: memref<64x128xbf16, #tpu.memory_space<vmem>>, %arg2: memref<2x32xf32, #tpu.memory_space<vmem>>, %arg3: memref<2x32xf32, #tpu.memory_space<vmem>>, %arg4: memref<2x4xf32, #tpu.memory_space<vmem>>, %arg5: memref<32x128xbf16, #tpu.memory_space<vmem>>, %arg6: memref<1x128xf32, #tpu.memory_space<vmem>>, %arg7: memref<32x32xbf16, #tpu.memory_space<vmem>>, %arg8: memref<1x32xf32, #tpu.memory_space<vmem>>, %arg9: memref<32x8xbf16, #tpu.memory_space<vmem>>, %arg10: memref<4x8xf32, #tpu.memory_space<vmem>>, %arg11: memref<1x8xf32, #tpu.memory_space<vmem>>, %arg12: memref<2x8xf32, #tpu.memory_space<vmem>>, %arg13: memref<2x32xf32, #tpu.memory_space<vmem>>, %arg14: memref<2x32xf32, #tpu.memory_space<vmem>>) attributes {dimension_semantics = [], scalar_prefetch = 0 : i64, scratch_operands = 0 : i64, tpu.core_type = #tpu.core_type<tc>} {
    %c0 = arith.constant 0 : index
    %c0_0 = arith.constant 0 : index
    %0 = vector.load %arg0[%c0, %c0_0] : memref<16x1xi32, #tpu.memory_space<vmem>>, vector<16x1xi32>
    %1 = tpu.iota {dimensions = array<i32: 1>} : vector<16x64xi32>
    %2 = vector.broadcast %0 : vector<16x1xi32> to vector<16x64xi32>
    %3 = arith.cmpi eq, %1, %2 : vector<16x64xi32>
    %cst = arith.constant 1.000000e+00 : f32
    %cst_1 = arith.constant 0.000000e+00 : f32
    %4 = vector.broadcast %cst : f32 to vector<16x64xf32>
    %5 = vector.broadcast %cst_1 : f32 to vector<16x64xf32>
    %6 = arith.select %3, %4, %5 : vector<16x64xi1>, vector<16x64xf32>
    %7 = arith.truncf %6 : vector<16x64xf32> to vector<16x64xbf16>
    %c0_2 = arith.constant 0 : index
    %c0_3 = arith.constant 0 : index
    %8 = vector.load %arg1[%c0_2, %c0_3] : memref<64x128xbf16, #tpu.memory_space<vmem>>, vector<64x128xbf16>
    %cst_4 = arith.constant dense<0.000000e+00> : vector<16x128xf32>
    %9 = tpu.matmul %7, %8, %cst_4 {dimension_numbers = #tpu.dot_dimension_numbers<[1], [0], [0], [1], [0, 0, 1, 1], [], []>} : vector<16x64xbf16>, vector<64x128xbf16>, vector<16x128xf32> -> vector<16x128xf32>
    %c0_5 = arith.constant 0 : index
    %c0_6 = arith.constant 0 : index
    %10 = vector.load %arg6[%c0_5, %c0_6] : memref<1x128xf32, #tpu.memory_space<vmem>>, vector<1x128xf32>
    %11 = vector.broadcast %10 : vector<1x128xf32> to vector<16x128xf32>
    %12 = arith.addf %9, %11 : vector<16x128xf32>
    %c0_7 = arith.constant 0 : index
    %c0_8 = arith.constant 0 : index
    %13 = vector.load %arg5[%c0_7, %c0_8] : memref<32x128xbf16, #tpu.memory_space<vmem>>, vector<32x128xbf16>
    %c0_9 = arith.constant 0 : index
    %c0_10 = arith.constant 0 : index
    %14 = vector.load %arg2[%c0_9, %c0_10] : memref<2x32xf32, #tpu.memory_space<vmem>>, vector<2x32xf32>
    %c0_11 = arith.constant 0 : index
    %c0_12 = arith.constant 0 : index
    %15 = vector.load %arg3[%c0_11, %c0_12] : memref<2x32xf32, #tpu.memory_space<vmem>>, vector<2x32xf32>
    %16 = vector.extract_strided_slice %12 {offsets = [0, 0], sizes = [2, 128], strides = [1, 1]} : vector<16x128xf32> to vector<2x128xf32>
    %17 = arith.truncf %14 : vector<2x32xf32> to vector<2x32xbf16>
    %cst_13 = arith.constant dense<0.000000e+00> : vector<2x128xf32>
    %18 = tpu.matmul %17, %13, %cst_13 {dimension_numbers = #tpu.dot_dimension_numbers<[1], [0], [0], [1], [0, 0, 1, 1], [], []>} : vector<2x32xbf16>, vector<32x128xbf16>, vector<2x128xf32> -> vector<2x128xf32>
    %19 = arith.addf %16, %18 : vector<2x128xf32>
    %20 = arith.negf %19 : vector<2x128xf32>
    %21 = math.exp %20 : vector<2x128xf32>
    %cst_14 = arith.constant 1.000000e+00 : f32
    %22 = vector.broadcast %cst_14 : f32 to vector<2x128xf32>
    %23 = arith.addf %22, %21 : vector<2x128xf32>
    %24 = arith.divf %22, %23 : vector<2x128xf32>
    %25 = vector.extract_strided_slice %24 {offsets = [0, 0], sizes = [2, 32], strides = [1, 1]} : vector<2x128xf32> to vector<2x32xf32>
    %26 = vector.extract_strided_slice %24 {offsets = [0, 32], sizes = [2, 32], strides = [1, 1]} : vector<2x128xf32> to vector<2x32xf32>
    %27 = vector.extract_strided_slice %24 {offsets = [0, 96], sizes = [2, 32], strides = [1, 1]} : vector<2x128xf32> to vector<2x32xf32>
    %28 = vector.extract_strided_slice %19 {offsets = [0, 64], sizes = [2, 32], strides = [1, 1]} : vector<2x128xf32> to vector<2x32xf32>
    %29 = math.tanh %28 : vector<2x32xf32>
    %30 = arith.mulf %26, %15 : vector<2x32xf32>
    %31 = arith.mulf %25, %29 : vector<2x32xf32>
    %32 = arith.addf %30, %31 : vector<2x32xf32>
    %33 = math.tanh %32 : vector<2x32xf32>
    %34 = arith.mulf %27, %33 : vector<2x32xf32>
    %35 = vector.extract_strided_slice %12 {offsets = [2, 0], sizes = [2, 128], strides = [1, 1]} : vector<16x128xf32> to vector<2x128xf32>
    %36 = arith.truncf %34 : vector<2x32xf32> to vector<2x32xbf16>
    %cst_15 = arith.constant dense<0.000000e+00> : vector<2x128xf32>
    %37 = tpu.matmul %36, %13, %cst_15 {dimension_numbers = #tpu.dot_dimension_numbers<[1], [0], [0], [1], [0, 0, 1, 1], [], []>} : vector<2x32xbf16>, vector<32x128xbf16>, vector<2x128xf32> -> vector<2x128xf32>
    %38 = arith.addf %35, %37 : vector<2x128xf32>
    %39 = arith.negf %38 : vector<2x128xf32>
    %40 = math.exp %39 : vector<2x128xf32>
    %cst_16 = arith.constant 1.000000e+00 : f32
    %41 = vector.broadcast %cst_16 : f32 to vector<2x128xf32>
    %42 = arith.addf %41, %40 : vector<2x128xf32>
    %43 = arith.divf %41, %42 : vector<2x128xf32>
    %44 = vector.extract_strided_slice %43 {offsets = [0, 0], sizes = [2, 32], strides = [1, 1]} : vector<2x128xf32> to vector<2x32xf32>
    %45 = vector.extract_strided_slice %43 {offsets = [0, 32], sizes = [2, 32], strides = [1, 1]} : vector<2x128xf32> to vector<2x32xf32>
    %46 = vector.extract_strided_slice %43 {offsets = [0, 96], sizes = [2, 32], strides = [1, 1]} : vector<2x128xf32> to vector<2x32xf32>
    %47 = vector.extract_strided_slice %38 {offsets = [0, 64], sizes = [2, 32], strides = [1, 1]} : vector<2x128xf32> to vector<2x32xf32>
    %48 = math.tanh %47 : vector<2x32xf32>
    %49 = arith.mulf %45, %32 : vector<2x32xf32>
    %50 = arith.mulf %44, %48 : vector<2x32xf32>
    %51 = arith.addf %49, %50 : vector<2x32xf32>
    %52 = math.tanh %51 : vector<2x32xf32>
    %53 = arith.mulf %46, %52 : vector<2x32xf32>
    %54 = vector.extract_strided_slice %12 {offsets = [4, 0], sizes = [2, 128], strides = [1, 1]} : vector<16x128xf32> to vector<2x128xf32>
    %55 = arith.truncf %53 : vector<2x32xf32> to vector<2x32xbf16>
    %cst_17 = arith.constant dense<0.000000e+00> : vector<2x128xf32>
    %56 = tpu.matmul %55, %13, %cst_17 {dimension_numbers = #tpu.dot_dimension_numbers<[1], [0], [0], [1], [0, 0, 1, 1], [], []>} : vector<2x32xbf16>, vector<32x128xbf16>, vector<2x128xf32> -> vector<2x128xf32>
    %57 = arith.addf %54, %56 : vector<2x128xf32>
    %58 = arith.negf %57 : vector<2x128xf32>
    %59 = math.exp %58 : vector<2x128xf32>
    %cst_18 = arith.constant 1.000000e+00 : f32
    %60 = vector.broadcast %cst_18 : f32 to vector<2x128xf32>
    %61 = arith.addf %60, %59 : vector<2x128xf32>
    %62 = arith.divf %60, %61 : vector<2x128xf32>
    %63 = vector.extract_strided_slice %62 {offsets = [0, 0], sizes = [2, 32], strides = [1, 1]} : vector<2x128xf32> to vector<2x32xf32>
    %64 = vector.extract_strided_slice %62 {offsets = [0, 32], sizes = [2, 32], strides = [1, 1]} : vector<2x128xf32> to vector<2x32xf32>
    %65 = vector.extract_strided_slice %62 {offsets = [0, 96], sizes = [2, 32], strides = [1, 1]} : vector<2x128xf32> to vector<2x32xf32>
    %66 = vector.extract_strided_slice %57 {offsets = [0, 64], sizes = [2, 32], strides = [1, 1]} : vector<2x128xf32> to vector<2x32xf32>
    %67 = math.tanh %66 : vector<2x32xf32>
    %68 = arith.mulf %64, %51 : vector<2x32xf32>
    %69 = arith.mulf %63, %67 : vector<2x32xf32>
    %70 = arith.addf %68, %69 : vector<2x32xf32>
    %71 = math.tanh %70 : vector<2x32xf32>
    %72 = arith.mulf %65, %71 : vector<2x32xf32>
    %73 = vector.extract_strided_slice %12 {offsets = [6, 0], sizes = [2, 128], strides = [1, 1]} : vector<16x128xf32> to vector<2x128xf32>
    %74 = arith.truncf %72 : vector<2x32xf32> to vector<2x32xbf16>
    %cst_19 = arith.constant dense<0.000000e+00> : vector<2x128xf32>
    %75 = tpu.matmul %74, %13, %cst_19 {dimension_numbers = #tpu.dot_dimension_numbers<[1], [0], [0], [1], [0, 0, 1, 1], [], []>} : vector<2x32xbf16>, vector<32x128xbf16>, vector<2x128xf32> -> vector<2x128xf32>
    %76 = arith.addf %73, %75 : vector<2x128xf32>
    %77 = arith.negf %76 : vector<2x128xf32>
    %78 = math.exp %77 : vector<2x128xf32>
    %cst_20 = arith.constant 1.000000e+00 : f32
    %79 = vector.broadcast %cst_20 : f32 to vector<2x128xf32>
    %80 = arith.addf %79, %78 : vector<2x128xf32>
    %81 = arith.divf %79, %80 : vector<2x128xf32>
    %82 = vector.extract_strided_slice %81 {offsets = [0, 0], sizes = [2, 32], strides = [1, 1]} : vector<2x128xf32> to vector<2x32xf32>
    %83 = vector.extract_strided_slice %81 {offsets = [0, 32], sizes = [2, 32], strides = [1, 1]} : vector<2x128xf32> to vector<2x32xf32>
    %84 = vector.extract_strided_slice %81 {offsets = [0, 96], sizes = [2, 32], strides = [1, 1]} : vector<2x128xf32> to vector<2x32xf32>
    %85 = vector.extract_strided_slice %76 {offsets = [0, 64], sizes = [2, 32], strides = [1, 1]} : vector<2x128xf32> to vector<2x32xf32>
    %86 = math.tanh %85 : vector<2x32xf32>
    %87 = arith.mulf %83, %70 : vector<2x32xf32>
    %88 = arith.mulf %82, %86 : vector<2x32xf32>
    %89 = arith.addf %87, %88 : vector<2x32xf32>
    %90 = math.tanh %89 : vector<2x32xf32>
    %91 = arith.mulf %84, %90 : vector<2x32xf32>
    %92 = vector.extract_strided_slice %12 {offsets = [8, 0], sizes = [2, 128], strides = [1, 1]} : vector<16x128xf32> to vector<2x128xf32>
    %93 = arith.truncf %91 : vector<2x32xf32> to vector<2x32xbf16>
    %cst_21 = arith.constant dense<0.000000e+00> : vector<2x128xf32>
    %94 = tpu.matmul %93, %13, %cst_21 {dimension_numbers = #tpu.dot_dimension_numbers<[1], [0], [0], [1], [0, 0, 1, 1], [], []>} : vector<2x32xbf16>, vector<32x128xbf16>, vector<2x128xf32> -> vector<2x128xf32>
    %95 = arith.addf %92, %94 : vector<2x128xf32>
    %96 = arith.negf %95 : vector<2x128xf32>
    %97 = math.exp %96 : vector<2x128xf32>
    %cst_22 = arith.constant 1.000000e+00 : f32
    %98 = vector.broadcast %cst_22 : f32 to vector<2x128xf32>
    %99 = arith.addf %98, %97 : vector<2x128xf32>
    %100 = arith.divf %98, %99 : vector<2x128xf32>
    %101 = vector.extract_strided_slice %100 {offsets = [0, 0], sizes = [2, 32], strides = [1, 1]} : vector<2x128xf32> to vector<2x32xf32>
    %102 = vector.extract_strided_slice %100 {offsets = [0, 32], sizes = [2, 32], strides = [1, 1]} : vector<2x128xf32> to vector<2x32xf32>
    %103 = vector.extract_strided_slice %100 {offsets = [0, 96], sizes = [2, 32], strides = [1, 1]} : vector<2x128xf32> to vector<2x32xf32>
    %104 = vector.extract_strided_slice %95 {offsets = [0, 64], sizes = [2, 32], strides = [1, 1]} : vector<2x128xf32> to vector<2x32xf32>
    %105 = math.tanh %104 : vector<2x32xf32>
    %106 = arith.mulf %102, %89 : vector<2x32xf32>
    %107 = arith.mulf %101, %105 : vector<2x32xf32>
    %108 = arith.addf %106, %107 : vector<2x32xf32>
    %109 = math.tanh %108 : vector<2x32xf32>
    %110 = arith.mulf %103, %109 : vector<2x32xf32>
    %111 = vector.extract_strided_slice %12 {offsets = [10, 0], sizes = [2, 128], strides = [1, 1]} : vector<16x128xf32> to vector<2x128xf32>
    %112 = arith.truncf %110 : vector<2x32xf32> to vector<2x32xbf16>
    %cst_23 = arith.constant dense<0.000000e+00> : vector<2x128xf32>
    %113 = tpu.matmul %112, %13, %cst_23 {dimension_numbers = #tpu.dot_dimension_numbers<[1], [0], [0], [1], [0, 0, 1, 1], [], []>} : vector<2x32xbf16>, vector<32x128xbf16>, vector<2x128xf32> -> vector<2x128xf32>
    %114 = arith.addf %111, %113 : vector<2x128xf32>
    %115 = arith.negf %114 : vector<2x128xf32>
    %116 = math.exp %115 : vector<2x128xf32>
    %cst_24 = arith.constant 1.000000e+00 : f32
    %117 = vector.broadcast %cst_24 : f32 to vector<2x128xf32>
    %118 = arith.addf %117, %116 : vector<2x128xf32>
    %119 = arith.divf %117, %118 : vector<2x128xf32>
    %120 = vector.extract_strided_slice %119 {offsets = [0, 0], sizes = [2, 32], strides = [1, 1]} : vector<2x128xf32> to vector<2x32xf32>
    %121 = vector.extract_strided_slice %119 {offsets = [0, 32], sizes = [2, 32], strides = [1, 1]} : vector<2x128xf32> to vector<2x32xf32>
    %122 = vector.extract_strided_slice %119 {offsets = [0, 96], sizes = [2, 32], strides = [1, 1]} : vector<2x128xf32> to vector<2x32xf32>
    %123 = vector.extract_strided_slice %114 {offsets = [0, 64], sizes = [2, 32], strides = [1, 1]} : vector<2x128xf32> to vector<2x32xf32>
    %124 = math.tanh %123 : vector<2x32xf32>
    %125 = arith.mulf %121, %108 : vector<2x32xf32>
    %126 = arith.mulf %120, %124 : vector<2x32xf32>
    %127 = arith.addf %125, %126 : vector<2x32xf32>
    %128 = math.tanh %127 : vector<2x32xf32>
    %129 = arith.mulf %122, %128 : vector<2x32xf32>
    %130 = vector.extract_strided_slice %12 {offsets = [12, 0], sizes = [2, 128], strides = [1, 1]} : vector<16x128xf32> to vector<2x128xf32>
    %131 = arith.truncf %129 : vector<2x32xf32> to vector<2x32xbf16>
    %cst_25 = arith.constant dense<0.000000e+00> : vector<2x128xf32>
    %132 = tpu.matmul %131, %13, %cst_25 {dimension_numbers = #tpu.dot_dimension_numbers<[1], [0], [0], [1], [0, 0, 1, 1], [], []>} : vector<2x32xbf16>, vector<32x128xbf16>, vector<2x128xf32> -> vector<2x128xf32>
    %133 = arith.addf %130, %132 : vector<2x128xf32>
    %134 = arith.negf %133 : vector<2x128xf32>
    %135 = math.exp %134 : vector<2x128xf32>
    %cst_26 = arith.constant 1.000000e+00 : f32
    %136 = vector.broadcast %cst_26 : f32 to vector<2x128xf32>
    %137 = arith.addf %136, %135 : vector<2x128xf32>
    %138 = arith.divf %136, %137 : vector<2x128xf32>
    %139 = vector.extract_strided_slice %138 {offsets = [0, 0], sizes = [2, 32], strides = [1, 1]} : vector<2x128xf32> to vector<2x32xf32>
    %140 = vector.extract_strided_slice %138 {offsets = [0, 32], sizes = [2, 32], strides = [1, 1]} : vector<2x128xf32> to vector<2x32xf32>
    %141 = vector.extract_strided_slice %138 {offsets = [0, 96], sizes = [2, 32], strides = [1, 1]} : vector<2x128xf32> to vector<2x32xf32>
    %142 = vector.extract_strided_slice %133 {offsets = [0, 64], sizes = [2, 32], strides = [1, 1]} : vector<2x128xf32> to vector<2x32xf32>
    %143 = math.tanh %142 : vector<2x32xf32>
    %144 = arith.mulf %140, %127 : vector<2x32xf32>
    %145 = arith.mulf %139, %143 : vector<2x32xf32>
    %146 = arith.addf %144, %145 : vector<2x32xf32>
    %147 = math.tanh %146 : vector<2x32xf32>
    %148 = arith.mulf %141, %147 : vector<2x32xf32>
    %149 = vector.extract_strided_slice %12 {offsets = [14, 0], sizes = [2, 128], strides = [1, 1]} : vector<16x128xf32> to vector<2x128xf32>
    %150 = arith.truncf %148 : vector<2x32xf32> to vector<2x32xbf16>
    %cst_27 = arith.constant dense<0.000000e+00> : vector<2x128xf32>
    %151 = tpu.matmul %150, %13, %cst_27 {dimension_numbers = #tpu.dot_dimension_numbers<[1], [0], [0], [1], [0, 0, 1, 1], [], []>} : vector<2x32xbf16>, vector<32x128xbf16>, vector<2x128xf32> -> vector<2x128xf32>
    %152 = arith.addf %149, %151 : vector<2x128xf32>
    %153 = arith.negf %152 : vector<2x128xf32>
    %154 = math.exp %153 : vector<2x128xf32>
    %cst_28 = arith.constant 1.000000e+00 : f32
    %155 = vector.broadcast %cst_28 : f32 to vector<2x128xf32>
    %156 = arith.addf %155, %154 : vector<2x128xf32>
    %157 = arith.divf %155, %156 : vector<2x128xf32>
    %158 = vector.extract_strided_slice %157 {offsets = [0, 0], sizes = [2, 32], strides = [1, 1]} : vector<2x128xf32> to vector<2x32xf32>
    %159 = vector.extract_strided_slice %157 {offsets = [0, 32], sizes = [2, 32], strides = [1, 1]} : vector<2x128xf32> to vector<2x32xf32>
    %160 = vector.extract_strided_slice %157 {offsets = [0, 96], sizes = [2, 32], strides = [1, 1]} : vector<2x128xf32> to vector<2x32xf32>
    %161 = vector.extract_strided_slice %152 {offsets = [0, 64], sizes = [2, 32], strides = [1, 1]} : vector<2x128xf32> to vector<2x32xf32>
    %162 = math.tanh %161 : vector<2x32xf32>
    %163 = arith.mulf %159, %146 : vector<2x32xf32>
    %164 = arith.mulf %158, %162 : vector<2x32xf32>
    %165 = arith.addf %163, %164 : vector<2x32xf32>
    %166 = math.tanh %165 : vector<2x32xf32>
    %167 = arith.mulf %160, %166 : vector<2x32xf32>
    %c0_29 = arith.constant 0 : index
    %c0_30 = arith.constant 0 : index
    %168 = vector.load %arg13[%c0_29, %c0_30] : memref<2x32xf32, #tpu.memory_space<vmem>>, vector<2x32xf32>
    tpu.vector_store %arg13[%c0_29, %c0_30], %167 {strides = array<i32>} : memref<2x32xf32, #tpu.memory_space<vmem>>, vector<2x32xf32>,
    %c0_31 = arith.constant 0 : index
    %c0_32 = arith.constant 0 : index
    %169 = vector.load %arg14[%c0_31, %c0_32] : memref<2x32xf32, #tpu.memory_space<vmem>>, vector<2x32xf32>
    tpu.vector_store %arg14[%c0_31, %c0_32], %165 {strides = array<i32>} : memref<2x32xf32, #tpu.memory_space<vmem>>, vector<2x32xf32>,
    %170 = arith.truncf %167 : vector<2x32xf32> to vector<2x32xbf16>
    %c0_33 = arith.constant 0 : index
    %c0_34 = arith.constant 0 : index
    %171 = vector.load %arg7[%c0_33, %c0_34] : memref<32x32xbf16, #tpu.memory_space<vmem>>, vector<32x32xbf16>
    %cst_35 = arith.constant dense<0.000000e+00> : vector<2x32xf32>
    %172 = tpu.matmul %170, %171, %cst_35 {dimension_numbers = #tpu.dot_dimension_numbers<[1], [0], [0], [1], [0, 0, 1, 1], [], []>} : vector<2x32xbf16>, vector<32x32xbf16>, vector<2x32xf32> -> vector<2x32xf32>
    %c0_36 = arith.constant 0 : index
    %c0_37 = arith.constant 0 : index
    %173 = vector.load %arg8[%c0_36, %c0_37] : memref<1x32xf32, #tpu.memory_space<vmem>>, vector<1x32xf32>
    %174 = vector.broadcast %173 : vector<1x32xf32> to vector<2x32xf32>
    %175 = arith.addf %172, %174 : vector<2x32xf32>
    %176 = arith.truncf %175 : vector<2x32xf32> to vector<2x32xbf16>
    %c0_38 = arith.constant 0 : index
    %c0_39 = arith.constant 0 : index
    %177 = vector.load %arg9[%c0_38, %c0_39] : memref<32x8xbf16, #tpu.memory_space<vmem>>, vector<32x8xbf16>
    %cst_40 = arith.constant dense<0.000000e+00> : vector<2x8xf32>
    %178 = tpu.matmul %176, %177, %cst_40 {dimension_numbers = #tpu.dot_dimension_numbers<[1], [0], [0], [1], [0, 0, 1, 1], [], []>} : vector<2x32xbf16>, vector<32x8xbf16>, vector<2x8xf32> -> vector<2x8xf32>
    %c0_41 = arith.constant 0 : index
    %c0_42 = arith.constant 0 : index
    %179 = vector.load %arg11[%c0_41, %c0_42] : memref<1x8xf32, #tpu.memory_space<vmem>>, vector<1x8xf32>
    %180 = vector.broadcast %179 : vector<1x8xf32> to vector<2x8xf32>
    %181 = arith.addf %178, %180 : vector<2x8xf32>
    %c0_43 = arith.constant 0 : index
    %c0_44 = arith.constant 0 : index
    %182 = vector.load %arg4[%c0_43, %c0_44] : memref<2x4xf32, #tpu.memory_space<vmem>>, vector<2x4xf32>
    %c0_45 = arith.constant 0 : index
    %c0_46 = arith.constant 0 : index
    %183 = vector.load %arg10[%c0_45, %c0_46] : memref<4x8xf32, #tpu.memory_space<vmem>>, vector<4x8xf32>
    %184 = vector.extract_strided_slice %182 {offsets = [0, 0], sizes = [2, 1], strides = [1, 1]} : vector<2x4xf32> to vector<2x1xf32>
    %185 = vector.extract_strided_slice %183 {offsets = [0, 0], sizes = [1, 8], strides = [1, 1]} : vector<4x8xf32> to vector<1x8xf32>
    %186 = vector.broadcast %184 : vector<2x1xf32> to vector<2x8xf32>
    %187 = vector.broadcast %185 : vector<1x8xf32> to vector<2x8xf32>
    %188 = arith.mulf %186, %187 : vector<2x8xf32>
    %189 = arith.addf %181, %188 : vector<2x8xf32>
    %190 = vector.extract_strided_slice %182 {offsets = [0, 1], sizes = [2, 1], strides = [1, 1]} : vector<2x4xf32> to vector<2x1xf32>
    %191 = vector.extract_strided_slice %183 {offsets = [1, 0], sizes = [1, 8], strides = [1, 1]} : vector<4x8xf32> to vector<1x8xf32>
    %192 = vector.broadcast %190 : vector<2x1xf32> to vector<2x8xf32>
    %193 = vector.broadcast %191 : vector<1x8xf32> to vector<2x8xf32>
    %194 = arith.mulf %192, %193 : vector<2x8xf32>
    %195 = arith.addf %189, %194 : vector<2x8xf32>
    %196 = vector.extract_strided_slice %182 {offsets = [0, 2], sizes = [2, 1], strides = [1, 1]} : vector<2x4xf32> to vector<2x1xf32>
    %197 = vector.extract_strided_slice %183 {offsets = [2, 0], sizes = [1, 8], strides = [1, 1]} : vector<4x8xf32> to vector<1x8xf32>
    %198 = vector.broadcast %196 : vector<2x1xf32> to vector<2x8xf32>
    %199 = vector.broadcast %197 : vector<1x8xf32> to vector<2x8xf32>
    %200 = arith.mulf %198, %199 : vector<2x8xf32>
    %201 = arith.addf %195, %200 : vector<2x8xf32>
    %202 = vector.extract_strided_slice %182 {offsets = [0, 3], sizes = [2, 1], strides = [1, 1]} : vector<2x4xf32> to vector<2x1xf32>
    %203 = vector.extract_strided_slice %183 {offsets = [3, 0], sizes = [1, 8], strides = [1, 1]} : vector<4x8xf32> to vector<1x8xf32>
    %204 = vector.broadcast %202 : vector<2x1xf32> to vector<2x8xf32>
    %205 = vector.broadcast %203 : vector<1x8xf32> to vector<2x8xf32>
    %206 = arith.mulf %204, %205 : vector<2x8xf32>
    %207 = arith.addf %201, %206 : vector<2x8xf32>
    %cst_47 = arith.constant dense<0xFF800000> : vector<2xf32>
    %208 = vector.multi_reduction <maximumf>, %207, %cst_47 [1] : vector<2x8xf32> to vector<2xf32>
    %209 = vector.shape_cast %208 : vector<2xf32> to vector<2x1xf32>
    %210 = vector.broadcast %209 : vector<2x1xf32> to vector<2x8xf32>
    %211 = arith.subf %207, %210 : vector<2x8xf32>
    %212 = math.exp %211 : vector<2x8xf32>
    %cst_48 = arith.constant dense<0.000000e+00> : vector<2xf32>
    %213 = vector.multi_reduction <add>, %212, %cst_48 [1] : vector<2x8xf32> to vector<2xf32>
    %214 = vector.shape_cast %213 : vector<2xf32> to vector<2x1xf32>
    %215 = math.log %214 : vector<2x1xf32>
    %216 = arith.addf %209, %215 : vector<2x1xf32>
    %217 = vector.broadcast %216 : vector<2x1xf32> to vector<2x8xf32>
    %218 = arith.subf %207, %217 : vector<2x8xf32>
    %c0_49 = arith.constant 0 : index
    %c0_50 = arith.constant 0 : index
    %219 = vector.load %arg12[%c0_49, %c0_50] : memref<2x8xf32, #tpu.memory_space<vmem>>, vector<2x8xf32>
    tpu.vector_store %arg12[%c0_49, %c0_50], %218 {strides = array<i32>} : memref<2x8xf32, #tpu.memory_space<vmem>>, vector<2x8xf32>,
    return
  }
}

</mosaic_0001>

<llo_original>
// kernel: lstm_text_classifier_forward.1
$region0: #{lstm_text_classifier_forward.1}
  #allocation0 [shape = 'u32[]', space=smem, size = 0x4, offset = 0x4, fixed_abs, tag = 'smem constant byte address 0x4 - core index']
  #allocation1 [shape = 'u32[144,128]{1,0:T(1,128)}', space=vmem, size = 0x12000, scoped, tag = 'internal scratch']
  %s0 = inlined_call_operand.vmem [shape: s32[16,1], index: 0, kind: input, shape index: {}]
  %s1 = inlined_call_operand.vmem [shape: bf16[64,128], index: 1, kind: input, shape index: {}]
  %s2 = inlined_call_operand.vmem [shape: f32[2,32], index: 2, kind: input, shape index: {}, may-alias: {2,13}]
  %s3 = inlined_call_operand.vmem [shape: f32[2,32], index: 3, kind: input, shape index: {}, may-alias: {3,14}]
  %s4 = inlined_call_operand.vmem [shape: f32[2,4], index: 4, kind: input, shape index: {}]
  %s5 = inlined_call_operand.vmem [shape: bf16[32,128], index: 5, kind: input, shape index: {}]
  %s6 = inlined_call_operand.vmem [shape: f32[1,128], index: 6, kind: input, shape index: {}]
  %s7 = inlined_call_operand.vmem [shape: bf16[32,32], index: 7, kind: input, shape index: {}]
  %s8 = inlined_call_operand.vmem [shape: f32[1,32], index: 8, kind: input, shape index: {}]
  %s9 = inlined_call_operand.vmem [shape: bf16[32,8], index: 9, kind: input, shape index: {}]
  %s10 = inlined_call_operand.vmem [shape: f32[4,8], index: 10, kind: input, shape index: {}]
  %s11 = inlined_call_operand.vmem [shape: f32[1,8], index: 11, kind: input, shape index: {}]
  %s12 = inlined_call_operand.hbm [shape: f32[2,8], index: 12, kind: output, shape index: {0}]
  %s13 = inlined_call_operand.vmem [shape: f32[2,32], index: 13, kind: output, shape index: {1}, may-alias: {2,13}]
  %s14 = inlined_call_operand.vmem [shape: f32[2,32], index: 14, kind: output, shape index: {2}, may-alias: {3,14}]
  %15 = xla_tuple %s12, %s13, %s14
  %s16 = sld [smem:[#allocation0]]
  $region74: #{lstm_text_classifier_forward.1} parent=0
    _
  %s18 = ssub.s32 1, %s16
  %s19 = scalar_select 0, %s18, %s16
  $region1: #{lstm_text_classifier_forward.1} parent=0
    #allocation2 [shape = 'u8[1024]{0}', space=vmem, size = 0x400, scoped, tag = 'output window, operand 0, single buffered']
    #allocation3 [shape = 's32[1]{0}', space=sflag, size = 0x4, scoped, tag = 'scoped memory for lstm_text_classifier_forward.1']
    %20 = vsyncpa [#allocation3], 0
    // Predicated region
    $region2: #{lstm_text_classifier_forward.1} parent=1 // pred_check
      _
    $region3: #{lstm_text_classifier_forward.1} parent=1 // pred_check_branch
      %22 = sbr.rel (0) target = $region5
    $region4: #{lstm_text_classifier_forward.1} parent=1 // pred_region
      _
    $region5: #{lstm_text_classifier_forward.1} parent=1 // pred_fallthru
      _
    // Predicated region
    $region6: #{lstm_text_classifier_forward.1} parent=1 // pred_check
      _
    $region7: #{lstm_text_classifier_forward.1} parent=1 // pred_check_branch
      %24 = sbr.rel (0) target = $region9
    $region8: #{lstm_text_classifier_forward.1} parent=1 // pred_region
      _
    $region9: #{lstm_text_classifier_forward.1} parent=1 // pred_fallthru
      _
    // Predicated region
    $region10: #{lstm_text_classifier_forward.1} parent=1 // pred_check
      _
    $region11: #{lstm_text_classifier_forward.1} parent=1 // pred_check_branch
      %26 = sbr.rel (0) target = $region13
    $region12: #{lstm_text_classifier_forward.1} parent=1 // pred_region
      _
    $region13: #{lstm_text_classifier_forward.1} parent=1 // pred_fallthru
      _
    // Predicated region
    $region14: #{lstm_text_classifier_forward.1} parent=1 // pred_check
      _
    $region15: #{lstm_text_classifier_forward.1} parent=1 // pred_check_branch
      %28 = sbr.rel (0) target = $region17
    $region16: #{lstm_text_classifier_forward.1} parent=1 // pred_region
      _
    $region17: #{lstm_text_classifier_forward.1} parent=1 // pred_fallthru
      _
    // Predicated region
    $region18: #{lstm_text_classifier_forward.1} parent=1 // pred_check
      _
    $region19: #{lstm_text_classifier_forward.1} parent=1 // pred_check_branch
      %30 = sbr.rel (0) target = $region21
    $region20: #{lstm_text_classifier_forward.1} parent=1 // pred_region
      _
    $region21: #{lstm_text_classifier_forward.1} parent=1 // pred_fallthru
      _
    // Predicated region
    $region22: #{lstm_text_classifier_forward.1} parent=1 // pred_check
      _
    $region23: #{lstm_text_classifier_forward.1} parent=1 // pred_check_branch
      %32 = sbr.rel (0) target = $region25
    $region24: #{lstm_text_classifier_forward.1} parent=1 // pred_region
      _
    $region25: #{lstm_text_classifier_forward.1} parent=1 // pred_fallthru
      _
    // Predicated region
    $region26: #{lstm_text_classifier_forward.1} parent=1 // pred_check
      _
    $region27: #{lstm_text_classifier_forward.1} parent=1 // pred_check_branch
      %34 = sbr.rel (0) target = $region29
    $region28: #{lstm_text_classifier_forward.1} parent=1 // pred_region
      _
    $region29: #{lstm_text_classifier_forward.1} parent=1 // pred_fallthru
      _
    // Predicated region
    $region30: #{lstm_text_classifier_forward.1} parent=1 // pred_check
      _
    $region31: #{lstm_text_classifier_forward.1} parent=1 // pred_check_branch
      %36 = sbr.rel (0) target = $region33
    $region32: #{lstm_text_classifier_forward.1} parent=1 // pred_region
      _
    $region33: #{lstm_text_classifier_forward.1} parent=1 // pred_fallthru
      _
    // Predicated region
    $region34: #{lstm_text_classifier_forward.1} parent=1 // pred_check
      _
    $region35: #{lstm_text_classifier_forward.1} parent=1 // pred_check_branch
      %38 = sbr.rel (0) target = $region37
    $region36: #{lstm_text_classifier_forward.1} parent=1 // pred_region
      _
    $region37: #{lstm_text_classifier_forward.1} parent=1 // pred_fallthru
      _
    // Predicated region
    $region38: #{lstm_text_classifier_forward.1} parent=1 // pred_check
      _
    $region39: #{lstm_text_classifier_forward.1} parent=1 // pred_check_branch
      %40 = sbr.rel (0) target = $region41
    $region40: #{lstm_text_classifier_forward.1} parent=1 // pred_region
      _
    $region41: #{lstm_text_classifier_forward.1} parent=1 // pred_fallthru
      _
    // Predicated region
    $region42: #{lstm_text_classifier_forward.1} parent=1 // pred_check
      _
    $region43: #{lstm_text_classifier_forward.1} parent=1 // pred_check_branch
      %42 = sbr.rel (0) target = $region45
    $region44: #{lstm_text_classifier_forward.1} parent=1 // pred_region
      _
    $region45: #{lstm_text_classifier_forward.1} parent=1 // pred_fallthru
      _
    // Predicated region
    $region46: #{lstm_text_classifier_forward.1} parent=1 // pred_check
      _
    $region47: #{lstm_text_classifier_forward.1} parent=1 // pred_check_branch
      %44 = sbr.rel (0) target = $region49
    $region48: #{lstm_text_classifier_forward.1} parent=1 // pred_region
      _
    $region49: #{lstm_text_classifier_forward.1} parent=1 // pred_fallthru
      _
    %v46 = vld [vmem:[%s0] sm:$0xff]
    %v47 = vld [vmem:[%s0 + $0x8] sm:$0xff]
    %v48 = vlaneseq
    %v49 = vand.u32 %v48, 127
    %50 = vset.pattern.permute.xlu0 0
    %51 = vperm.xlu0 %50, %v46
    %v52 = vpop.permute.xlu0 %51
    %53 = vset.pattern.permute.xlu0 0
    %54 = vperm.xlu0 %53, %v47
    %v55 = vpop.permute.xlu0 %54
    %vm56 = vcmp.eq.s32.totalorder %v49, %v52
    %vm57 = vcmp.eq.s32.totalorder %v49, %v55
    %v58 = vsel %vm56, 1.0, 0.0
    %v59 = vsel %vm57, 1.0, 0.0
    %v60 = vpack.c.bf16 %v59, %v58
    %v61 = vld [vmem:[%s1] sm:$0xf]
    %v62 = vld [vmem:[%s1 + $0x4] sm:$0xf]
    %v63 = vld [vmem:[%s1 + $0x8] sm:$0xf]
    %v64 = vld [vmem:[%s1 + $0xc] sm:$0xf]
    %v65 = vld [vmem:[%s1 + $0x10] sm:$0xf]
    %v66 = vld [vmem:[%s1 + $0x14] sm:$0xf]
    %v67 = vld [vmem:[%s1 + $0x18] sm:$0xf]
    %v68 = vld [vmem:[%s1 + $0x1c] sm:$0xf]
    %v69 = vld [vmem:[%s6] sm:$0x1]
    %v71 = vlaneseq
    %v72 = vshrl.u32 %v71, 7
    %v73 = vsub.s32 0, %v72
    %v74 = vrot.slane %v69, %v73
    %v84 = vunpack.c.l.b16 %v61
    %v85 = vunpack.c.l.b16 %v62
    %v86 = vunpack.c.l.b16 %v63
    %v87 = vunpack.c.l.b16 %v64
    %v88 = vunpack.c.l.b16 %v65
    %v89 = vunpack.c.l.b16 %v66
    %v90 = vunpack.c.l.b16 %v67
    %v91 = vunpack.c.l.b16 %v68
    %v92 = vpack.c.b16 %v85, %v84
    %v93 = vpack.c.b16 %v87, %v86
    %v94 = vpack.c.b16 %v89, %v88
    %v95 = vpack.c.b16 %v91, %v90
    %vm100 = vcmask 523264
    %v102 = vsel %vm100, %v60, 0
    %104 = vmatprep.subr.bf16.mxu0 0
    %105 = vmatpush1.bf16.msra.mxu0 %v92
    %106 = vmatprep.subr.bf16.mxu0 0
    %107 = vmatpush1.bf16.msra.mxu0 %v93
    %108 = vmatprep.subr.bf16.mxu0 0
    %109 = vmatpush1.bf16.msra.mxu0 %v94
    %110 = vmatprep.subr.bf16.mxu0 0
    %111 = vmatpush1.bf16.msra.mxu0 %v95
    %112 = vmatprep.subr.bf16.mxu0 0
    %113 = vmatpush1.bf16.msra.mxu0 0
    %114 = vmatprep.subr.bf16.mxu0 0
    %115 = vmatpush1.bf16.msra.mxu0 0
    %116 = vmatprep.subr.bf16.mxu0 0
    %117 = vmatpush1.bf16.msra.mxu0 0
    %118 = vmatprep.subr.bf16.mxu0 0
    %119 = vmatpush1.bf16.msra.mxu0 0
    %120 = vmatprep.subr.bf16.mxu0 0
    %121 = vmatpush1.bf16.msra.mxu0 0
    %122 = vmatprep.subr.bf16.mxu0 0
    %123 = vmatpush1.bf16.msra.mxu0 0
    %124 = vmatprep.subr.bf16.mxu0 0
    %125 = vmatpush1.bf16.msra.mxu0 0
    %126 = vmatprep.subr.bf16.mxu0 0
    %127 = vmatpush1.bf16.msra.mxu0 0
    %128 = vmatprep.subr.bf16.mxu0 0
    %129 = vmatpush1.bf16.msra.mxu0 0
    %130 = vmatprep.subr.bf16.mxu0 0
    %131 = vmatpush1.bf16.msra.mxu0 0
    %132 = vmatprep.subr.bf16.mxu0 0
    %133 = vmatpush1.bf16.msra.mxu0 0
    %134 = vmatprep.subr.bf16.mxu0 0
    %135 = vmatpush1.bf16.msra.mxu0 0
    %136 = vmatprep.mubr.bf16.mxu0 0
    %137 = vmatmul.mubr.bf16.gmra.mrb[0].mxu0 %v102
    %v138 = vpop.f32.mrb[0].mxu0
    %v139 = vadd.f32 %v74, %v138
    %v140 = vpop.f32.mrb[0].mxu0
    %v141 = vpop.f32.mrb[0].mxu0
    %v142 = vadd.f32 %v74, %v141
    %v143 = vpop.f32.mrb[0].mxu0
    %144 = vdwg.mxu0
    %v145 = vld [vmem:[%s5] sm:$0xf]
    %v146 = vld [vmem:[%s5 + $0x4] sm:$0xf]
    %v147 = vld [vmem:[%s5 + $0x8] sm:$0xf]
    %v148 = vld [vmem:[%s5 + $0xc] sm:$0xf]
    %v149 = vld [vmem:[%s2] sm:$0x3]
    %v150 = vld [vmem:[%s3] sm:$0x3]
    %v151 = vpack.c.bf16 %v149, %v149
    %v156 = vunpack.c.l.b16 %v145
    %v157 = vunpack.c.l.b16 %v146
    %v158 = vunpack.c.l.b16 %v147
    %v159 = vunpack.c.l.b16 %v148
    %v160 = vpack.c.b16 %v157, %v156
    %v161 = vpack.c.b16 %v159, %v158
    %vm164 = vcmask 261120
    %v166 = vsel %vm164, %v151, 0
    %168 = vmatprep.subr.bf16.mxu0 0
    %169 = vmatpush1.bf16.msra.mxu0 %v160
    %170 = vmatprep.subr.bf16.mxu0 0
    %171 = vmatpush1.bf16.msra.mxu0 %v161
    %172 = vmatprep.subr.bf16.mxu0 0
    %173 = vmatpush1.bf16.msra.mxu0 0
    %174 = vmatprep.subr.bf16.mxu0 0
    %175 = vmatpush1.bf16.msra.mxu0 0
    %176 = vmatprep.subr.bf16.mxu0 0
    %177 = vmatpush1.bf16.msra.mxu0 0
    %178 = vmatprep.subr.bf16.mxu0 0
    %179 = vmatpush1.bf16.msra.mxu0 0
    %180 = vmatprep.subr.bf16.mxu0 0
    %181 = vmatpush1.bf16.msra.mxu0 0
    %182 = vmatprep.subr.bf16.mxu0 0
    %183 = vmatpush1.bf16.msra.mxu0 0
    %184 = vmatprep.subr.bf16.mxu0 0
    %185 = vmatpush1.bf16.msra.mxu0 0
    %186 = vmatprep.subr.bf16.mxu0 0
    %187 = vmatpush1.bf16.msra.mxu0 0
    %188 = vmatprep.subr.bf16.mxu0 0
    %189 = vmatpush1.bf16.msra.mxu0 0
    %190 = vmatprep.subr.bf16.mxu0 0
    %191 = vmatpush1.bf16.msra.mxu0 0
    %192 = vmatprep.subr.bf16.mxu0 0
    %193 = vmatpush1.bf16.msra.mxu0 0
    %194 = vmatprep.subr.bf16.mxu0 0
    %195 = vmatpush1.bf16.msra.mxu0 0
    %196 = vmatprep.subr.bf16.mxu0 0
    %197 = vmatpush1.bf16.msra.mxu0 0
    %198 = vmatprep.subr.bf16.mxu0 0
    %199 = vmatpush1.bf16.msra.mxu0 0
    %200 = vmatprep.mubr.bf16.mxu0 0
    %201 = vmatmul.mubr.bf16.gmra.mrb[0].mxu0 %v166
    %v202 = vpop.f32.mrb[0].mxu0
    %v203 = vadd.f32 0.0, %v202
    %v204 = vpop.f32.mrb[0].mxu0
    %v205 = vpop.f32.mrb[0].mxu0
    %v206 = vpop.f32.mrb[0].mxu0
    %207 = vdwg.mxu0
    %v208 = vadd.f32 %v139, %v203
    %v209 = vxor.u32 %v208, 2147483648
    %v210 = vmul.f32 %v209, 1.442695
    %v211 = vpow.pop %v210
    %v212 = vadd.f32 %v211, 1.0
    %v213 = vrcp.pop %v212
    %v214 = vmul.f32 1.0, %v213
    %v215 = vtanh.pop %v208
    %217 = vrot.lane.b32.xlu0 %v150, 32
    %v218 = vpop.permute.xlu0 %217
    %v220 = vmul.f32 %v214, %v218
    %222 = vrot.lane.b32.xlu0 %v215, 64
    %v223 = vpop.permute.xlu0 %222
    %v225 = vmul.f32 %v214, %v223
    %227 = vrot.lane.b32.xlu0 %v225, 32
    %v228 = vpop.permute.xlu0 %227
    %v230 = vadd.f32 %v220, %v228
    %v231 = vtanh.pop %v230
    %233 = vrot.lane.b32.xlu0 %v231, 64
    %v234 = vpop.permute.xlu0 %233
    %v236 = vmul.f32 %v214, %v234
    %v237 = vpack.c.bf16 %v236, %v236
    %239 = vrot.lane.b32.xlu0 %v237, 32
    %v240 = vpop.permute.xlu0 %239
    %v242 = vsel %vm164, %v240, 0
    %244 = vmatprep.subr.bf16.mxu0 0
    %245 = vmatpush1.bf16.msra.mxu0 %v160
    %246 = vmatprep.subr.bf16.mxu0 0
    %247 = vmatpush1.bf16.msra.mxu0 %v161
    %248 = vmatprep.subr.bf16.mxu0 0
    %249 = vmatpush1.bf16.msra.mxu0 0
    %250 = vmatprep.subr.bf16.mxu0 0
    %251 = vmatpush1.bf16.msra.mxu0 0
    %252 = vmatprep.subr.bf16.mxu0 0
    %253 = vmatpush1.bf16.msra.mxu0 0
    %254 = vmatprep.subr.bf16.mxu0 0
    %255 = vmatpush1.bf16.msra.mxu0 0
    %256 = vmatprep.subr.bf16.mxu0 0
    %257 = vmatpush1.bf16.msra.mxu0 0
    %258 = vmatprep.subr.bf16.mxu0 0
    %259 = vmatpush1.bf16.msra.mxu0 0
    %260 = vmatprep.subr.bf16.mxu0 0
    %261 = vmatpush1.bf16.msra.mxu0 0
    %262 = vmatprep.subr.bf16.mxu0 0
    %263 = vmatpush1.bf16.msra.mxu0 0
    %264 = vmatprep.subr.bf16.mxu0 0
    %265 = vmatpush1.bf16.msra.mxu0 0
    %266 = vmatprep.subr.bf16.mxu0 0
    %267 = vmatpush1.bf16.msra.mxu0 0
    %268 = vmatprep.subr.bf16.mxu0 0
    %269 = vmatpush1.bf16.msra.mxu0 0
    %270 = vmatprep.subr.bf16.mxu0 0
    %271 = vmatpush1.bf16.msra.mxu0 0
    %272 = vmatprep.subr.bf16.mxu0 0
    %273 = vmatpush1.bf16.msra.mxu0 0
    %274 = vmatprep.subr.bf16.mxu0 0
    %275 = vmatpush1.bf16.msra.mxu0 0
    %276 = vmatprep.mubr.bf16.mxu0 0
    %277 = vmatmul.mubr.bf16.gmra.mrb[0].mxu0 %v242
    %v278 = vpop.f32.mrb[0].mxu0
    %v279 = vadd.f32 0.0, %v278
    %v280 = vpop.f32.mrb[0].mxu0
    %v281 = vpop.f32.mrb[0].mxu0
    %v282 = vpop.f32.mrb[0].mxu0
    %283 = vdwg.mxu0
    %v285 = vrot.slane %v279, 6
    %v287 = vadd.f32 %v139, %v285
    %v288 = vxor.u32 %v287, 2147483648
    %v289 = vmul.f32 %v288, 1.442695
    %v290 = vpow.pop %v289
    %v291 = vadd.f32 %v290, 1.0
    %v292 = vrcp.pop %v291
    %v293 = vmul.f32 1.0, %v292
    %v294 = vtanh.pop %v287
    %v296 = vrot.slane %v230, 6
    %v298 = vmul.f32 %v293, %v296
    %300 = vrot.lane.b32.xlu0 %v294, 64
    %v301 = vpop.permute.xlu0 %300
    %v303 = vmul.f32 %v293, %v301
    %305 = vrot.lane.b32.xlu0 %v303, 32
    %v306 = vpop.permute.xlu0 %305
    %v308 = vadd.f32 %v298, %v306
    %v309 = vtanh.pop %v308
    %311 = vrot.lane.b32.xlu0 %v309, 64
    %v312 = vpop.permute.xlu0 %311
    %v314 = vmul.f32 %v293, %v312
    %v315 = vpack.c.bf16 %v314, %v314
    %v317 = vrot.slane %v315, 1
    %318 = vrot.lane.b32.xlu0 %v317, 32
    %v319 = vpop.permute.xlu0 %318
    %v321 = vsel %vm164, %v319, 0
    %323 = vmatprep.subr.bf16.mxu0 0
    %324 = vmatpush1.bf16.msra.mxu0 %v160
    %325 = vmatprep.subr.bf16.mxu0 0
    %326 = vmatpush1.bf16.msra.mxu0 %v161
    %327 = vmatprep.subr.bf16.mxu0 0
    %328 = vmatpush1.bf16.msra.mxu0 0
    %329 = vmatprep.subr.bf16.mxu0 0
    %330 = vmatpush1.bf16.msra.mxu0 0
    %331 = vmatprep.subr.bf16.mxu0 0
    %332 = vmatpush1.bf16.msra.mxu0 0
    %333 = vmatprep.subr.bf16.mxu0 0
    %334 = vmatpush1.bf16.msra.mxu0 0
    %335 = vmatprep.subr.bf16.mxu0 0
    %336 = vmatpush1.bf16.msra.mxu0 0
    %337 = vmatprep.subr.bf16.mxu0 0
    %338 = vmatpush1.bf16.msra.mxu0 0
    %339 = vmatprep.subr.bf16.mxu0 0
    %340 = vmatpush1.bf16.msra.mxu0 0
    %341 = vmatprep.subr.bf16.mxu0 0
    %342 = vmatpush1.bf16.msra.mxu0 0
    %343 = vmatprep.subr.bf16.mxu0 0
    %344 = vmatpush1.bf16.msra.mxu0 0
    %345 = vmatprep.subr.bf16.mxu0 0
    %346 = vmatpush1.bf16.msra.mxu0 0
    %347 = vmatprep.subr.bf16.mxu0 0
    %348 = vmatpush1.bf16.msra.mxu0 0
    %349 = vmatprep.subr.bf16.mxu0 0
    %350 = vmatpush1.bf16.msra.mxu0 0
    %351 = vmatprep.subr.bf16.mxu0 0
    %352 = vmatpush1.bf16.msra.mxu0 0
    %353 = vmatprep.subr.bf16.mxu0 0
    %354 = vmatpush1.bf16.msra.mxu0 0
    %355 = vmatprep.mubr.bf16.mxu0 0
    %356 = vmatmul.mubr.bf16.gmra.mrb[0].mxu0 %v321
    %v357 = vpop.f32.mrb[0].mxu0
    %v358 = vadd.f32 0.0, %v357
    %v359 = vpop.f32.mrb[0].mxu0
    %v360 = vpop.f32.mrb[0].mxu0
    %v361 = vpop.f32.mrb[0].mxu0
    %362 = vdwg.mxu0
    %v364 = vrot.slane %v358, 4
    %v366 = vadd.f32 %v139, %v364
    %v367 = vxor.u32 %v366, 2147483648
    %v368 = vmul.f32 %v367, 1.442695
    %v369 = vpow.pop %v368
    %v370 = vadd.f32 %v369, 1.0
    %v371 = vrcp.pop %v370
    %v372 = vmul.f32 1.0, %v371
    %v373 = vtanh.pop %v366
    %v375 = vrot.slane %v308, 6
    %v377 = vmul.f32 %v372, %v375
    %379 = vrot.lane.b32.xlu0 %v373, 64
    %v380 = vpop.permute.xlu0 %379
    %v382 = vmul.f32 %v372, %v380
    %384 = vrot.lane.b32.xlu0 %v382, 32
    %v385 = vpop.permute.xlu0 %384
    %v387 = vadd.f32 %v377, %v385
    %v388 = vtanh.pop %v387
    %390 = vrot.lane.b32.xlu0 %v388, 64
    %v391 = vpop.permute.xlu0 %390
    %v393 = vmul.f32 %v372, %v391
    %v394 = vpack.c.bf16 %v393, %v393
    %v396 = vrot.slane %v394, 2
    %397 = vrot.lane.b32.xlu0 %v396, 32
    %v398 = vpop.permute.xlu0 %397
    %v400 = vsel %vm164, %v398, 0
    %402 = vmatprep.subr.bf16.mxu0 0
    %403 = vmatpush1.bf16.msra.mxu0 %v160
    %404 = vmatprep.subr.bf16.mxu0 0
    %405 = vmatpush1.bf16.msra.mxu0 %v161
    %406 = vmatprep.subr.bf16.mxu0 0
    %407 = vmatpush1.bf16.msra.mxu0 0
    %408 = vmatprep.subr.bf16.mxu0 0
    %409 = vmatpush1.bf16.msra.mxu0 0
    %410 = vmatprep.subr.bf16.mxu0 0
    %411 = vmatpush1.bf16.msra.mxu0 0
    %412 = vmatprep.subr.bf16.mxu0 0
    %413 = vmatpush1.bf16.msra.mxu0 0
    %414 = vmatprep.subr.bf16.mxu0 0
    %415 = vmatpush1.bf16.msra.mxu0 0
    %416 = vmatprep.subr.bf16.mxu0 0
    %417 = vmatpush1.bf16.msra.mxu0 0
    %418 = vmatprep.subr.bf16.mxu0 0
    %419 = vmatpush1.bf16.msra.mxu0 0
    %420 = vmatprep.subr.bf16.mxu0 0
    %421 = vmatpush1.bf16.msra.mxu0 0
    %422 = vmatprep.subr.bf16.mxu0 0
    %423 = vmatpush1.bf16.msra.mxu0 0
    %424 = vmatprep.subr.bf16.mxu0 0
    %425 = vmatpush1.bf16.msra.mxu0 0
    %426 = vmatprep.subr.bf16.mxu0 0
    %427 = vmatpush1.bf16.msra.mxu0 0
    %428 = vmatprep.subr.bf16.mxu0 0
    %429 = vmatpush1.bf16.msra.mxu0 0
    %430 = vmatprep.subr.bf16.mxu0 0
    %431 = vmatpush1.bf16.msra.mxu0 0
    %432 = vmatprep.subr.bf16.mxu0 0
    %433 = vmatpush1.bf16.msra.mxu0 0
    %434 = vmatprep.mubr.bf16.mxu0 0
    %435 = vmatmul.mubr.bf16.gmra.mrb[0].mxu0 %v400
    %v436 = vpop.f32.mrb[0].mxu0
    %v437 = vadd.f32 0.0, %v436
    %v438 = vpop.f32.mrb[0].mxu0
    %v439 = vpop.f32.mrb[0].mxu0
    %v440 = vpop.f32.mrb[0].mxu0
    %441 = vdwg.mxu0
    %v443 = vrot.slane %v437, 2
    %v445 = vadd.f32 %v139, %v443
    %v446 = vxor.u32 %v445, 2147483648
    %v447 = vmul.f32 %v446, 1.442695
    %v448 = vpow.pop %v447
    %v449 = vadd.f32 %v448, 1.0
    %v450 = vrcp.pop %v449
    %v451 = vmul.f32 1.0, %v450
    %v452 = vtanh.pop %v445
    %v454 = vrot.slane %v387, 6
    %v456 = vmul.f32 %v451, %v454
    %458 = vrot.lane.b32.xlu0 %v452, 64
    %v459 = vpop.permute.xlu0 %458
    %v461 = vmul.f32 %v451, %v459
    %463 = vrot.lane.b32.xlu0 %v461, 32
    %v464 = vpop.permute.xlu0 %463
    %v466 = vadd.f32 %v456, %v464
    %v467 = vtanh.pop %v466
    %469 = vrot.lane.b32.xlu0 %v467, 64
    %v470 = vpop.permute.xlu0 %469
    %v472 = vmul.f32 %v451, %v470
    %v473 = vpack.c.bf16 %v472, %v472
    %v475 = vrot.slane %v473, 3
    %476 = vrot.lane.b32.xlu0 %v475, 32
    %v477 = vpop.permute.xlu0 %476
    %v479 = vsel %vm164, %v477, 0
    %481 = vmatprep.subr.bf16.mxu0 0
    %482 = vmatpush1.bf16.msra.mxu0 %v160
    %483 = vmatprep.subr.bf16.mxu0 0
    %484 = vmatpush1.bf16.msra.mxu0 %v161
    %485 = vmatprep.subr.bf16.mxu0 0
    %486 = vmatpush1.bf16.msra.mxu0 0
    %487 = vmatprep.subr.bf16.mxu0 0
    %488 = vmatpush1.bf16.msra.mxu0 0
    %489 = vmatprep.subr.bf16.mxu0 0
    %490 = vmatpush1.bf16.msra.mxu0 0
    %491 = vmatprep.subr.bf16.mxu0 0
    %492 = vmatpush1.bf16.msra.mxu0 0
    %493 = vmatprep.subr.bf16.mxu0 0
    %494 = vmatpush1.bf16.msra.mxu0 0
    %495 = vmatprep.subr.bf16.mxu0 0
    %496 = vmatpush1.bf16.msra.mxu0 0
    %497 = vmatprep.subr.bf16.mxu0 0
    %498 = vmatpush1.bf16.msra.mxu0 0
    %499 = vmatprep.subr.bf16.mxu0 0
    %500 = vmatpush1.bf16.msra.mxu0 0
    %501 = vmatprep.subr.bf16.mxu0 0
    %502 = vmatpush1.bf16.msra.mxu0 0
    %503 = vmatprep.subr.bf16.mxu0 0
    %504 = vmatpush1.bf16.msra.mxu0 0
    %505 = vmatprep.subr.bf16.mxu0 0
    %506 = vmatpush1.bf16.msra.mxu0 0
    %507 = vmatprep.subr.bf16.mxu0 0
    %508 = vmatpush1.bf16.msra.mxu0 0
    %509 = vmatprep.subr.bf16.mxu0 0
    %510 = vmatpush1.bf16.msra.mxu0 0
    %511 = vmatprep.subr.bf16.mxu0 0
    %512 = vmatpush1.bf16.msra.mxu0 0
    %513 = vmatprep.mubr.bf16.mxu0 0
    %514 = vmatmul.mubr.bf16.gmra.mrb[0].mxu0 %v479
    %v515 = vpop.f32.mrb[0].mxu0
    %v516 = vadd.f32 0.0, %v515
    %v517 = vpop.f32.mrb[0].mxu0
    %v518 = vpop.f32.mrb[0].mxu0
    %v519 = vpop.f32.mrb[0].mxu0
    %520 = vdwg.mxu0
    %v521 = vadd.f32 %v142, %v516
    %v522 = vxor.u32 %v521, 2147483648
    %v523 = vmul.f32 %v522, 1.442695
    %v524 = vpow.pop %v523
    %v525 = vadd.f32 %v524, 1.0
    %v526 = vrcp.pop %v525
    %v527 = vmul.f32 1.0, %v526
    %v528 = vtanh.pop %v521
    %v530 = vrot.slane %v466, 6
    %v532 = vmul.f32 %v527, %v530
    %534 = vrot.lane.b32.xlu0 %v528, 64
    %v535 = vpop.permute.xlu0 %534
    %v537 = vmul.f32 %v527, %v535
    %539 = vrot.lane.b32.xlu0 %v537, 32
    %v540 = vpop.permute.xlu0 %539
    %v542 = vadd.f32 %v532, %v540
    %v543 = vtanh.pop %v542
    %545 = vrot.lane.b32.xlu0 %v543, 64
    %v546 = vpop.permute.xlu0 %545
    %v548 = vmul.f32 %v527, %v546
    %v549 = vpack.c.bf16 %v548, %v548
    %551 = vrot.lane.b32.xlu0 %v549, 32
    %v552 = vpop.permute.xlu0 %551
    %v554 = vsel %vm164, %v552, 0
    %556 = vmatprep.subr.bf16.mxu0 0
    %557 = vmatpush1.bf16.msra.mxu0 %v160
    %558 = vmatprep.subr.bf16.mxu0 0
    %559 = vmatpush1.bf16.msra.mxu0 %v161
    %560 = vmatprep.subr.bf16.mxu0 0
    %561 = vmatpush1.bf16.msra.mxu0 0
    %562 = vmatprep.subr.bf16.mxu0 0
    %563 = vmatpush1.bf16.msra.mxu0 0
    %564 = vmatprep.subr.bf16.mxu0 0
    %565 = vmatpush1.bf16.msra.mxu0 0
    %566 = vmatprep.subr.bf16.mxu0 0
    %567 = vmatpush1.bf16.msra.mxu0 0
    %568 = vmatprep.subr.bf16.mxu0 0
    %569 = vmatpush1.bf16.msra.mxu0 0
    %570 = vmatprep.subr.bf16.mxu0 0
    %571 = vmatpush1.bf16.msra.mxu0 0
    %572 = vmatprep.subr.bf16.mxu0 0
    %573 = vmatpush1.bf16.msra.mxu0 0
    %574 = vmatprep.subr.bf16.mxu0 0
    %575 = vmatpush1.bf16.msra.mxu0 0
    %576 = vmatprep.subr.bf16.mxu0 0
    %577 = vmatpush1.bf16.msra.mxu0 0
    %578 = vmatprep.subr.bf16.mxu0 0
    %579 = vmatpush1.bf16.msra.mxu0 0
    %580 = vmatprep.subr.bf16.mxu0 0
    %581 = vmatpush1.bf16.msra.mxu0 0
    %582 = vmatprep.subr.bf16.mxu0 0
    %583 = vmatpush1.bf16.msra.mxu0 0
    %584 = vmatprep.subr.bf16.mxu0 0
    %585 = vmatpush1.bf16.msra.mxu0 0
    %586 = vmatprep.subr.bf16.mxu0 0
    %587 = vmatpush1.bf16.msra.mxu0 0
    %588 = vmatprep.mubr.bf16.mxu0 0
    %589 = vmatmul.mubr.bf16.gmra.mrb[0].mxu0 %v554
    %v590 = vpop.f32.mrb[0].mxu0
    %v591 = vadd.f32 0.0, %v590
    %v592 = vpop.f32.mrb[0].mxu0
    %v593 = vpop.f32.mrb[0].mxu0
    %v594 = vpop.f32.mrb[0].mxu0
    %595 = vdwg.mxu0
    %v597 = vrot.slane %v591, 6
    %v599 = vadd.f32 %v142, %v597
    %v600 = vxor.u32 %v599, 2147483648
    %v601 = vmul.f32 %v600, 1.442695
    %v602 = vpow.pop %v601
    %v603 = vadd.f32 %v602, 1.0
    %v604 = vrcp.pop %v603
    %v605 = vmul.f32 1.0, %v604
    %v606 = vtanh.pop %v599
    %v608 = vrot.slane %v542, 6
    %v610 = vmul.f32 %v605, %v608
    %612 = vrot.lane.b32.xlu0 %v606, 64
    %v613 = vpop.permute.xlu0 %612
    %v615 = vmul.f32 %v605, %v613
    %617 = vrot.lane.b32.xlu0 %v615, 32
    %v618 = vpop.permute.xlu0 %617
    %v620 = vadd.f32 %v610, %v618
    %v621 = vtanh.pop %v620
    %623 = vrot.lane.b32.xlu0 %v621, 64
    %v624 = vpop.permute.xlu0 %623
    %v626 = vmul.f32 %v605, %v624
    %v627 = vpack.c.bf16 %v626, %v626
    %v629 = vrot.slane %v627, 1
    %630 = vrot.lane.b32.xlu0 %v629, 32
    %v631 = vpop.permute.xlu0 %630
    %v633 = vsel %vm164, %v631, 0
    %635 = vmatprep.subr.bf16.mxu0 0
    %636 = vmatpush1.bf16.msra.mxu0 %v160
    %637 = vmatprep.subr.bf16.mxu0 0
    %638 = vmatpush1.bf16.msra.mxu0 %v161
    %639 = vmatprep.subr.bf16.mxu0 0
    %640 = vmatpush1.bf16.msra.mxu0 0
    %641 = vmatprep.subr.bf16.mxu0 0
    %642 = vmatpush1.bf16.msra.mxu0 0
    %643 = vmatprep.subr.bf16.mxu0 0
    %644 = vmatpush1.bf16.msra.mxu0 0
    %645 = vmatprep.subr.bf16.mxu0 0
    %646 = vmatpush1.bf16.msra.mxu0 0
    %647 = vmatprep.subr.bf16.mxu0 0
    %648 = vmatpush1.bf16.msra.mxu0 0
    %649 = vmatprep.subr.bf16.mxu0 0
    %650 = vmatpush1.bf16.msra.mxu0 0
    %651 = vmatprep.subr.bf16.mxu0 0
    %652 = vmatpush1.bf16.msra.mxu0 0
    %653 = vmatprep.subr.bf16.mxu0 0
    %654 = vmatpush1.bf16.msra.mxu0 0
    %655 = vmatprep.subr.bf16.mxu0 0
    %656 = vmatpush1.bf16.msra.mxu0 0
    %657 = vmatprep.subr.bf16.mxu0 0
    %658 = vmatpush1.bf16.msra.mxu0 0
    %659 = vmatprep.subr.bf16.mxu0 0
    %660 = vmatpush1.bf16.msra.mxu0 0
    %661 = vmatprep.subr.bf16.mxu0 0
    %662 = vmatpush1.bf16.msra.mxu0 0
    %663 = vmatprep.subr.bf16.mxu0 0
    %664 = vmatpush1.bf16.msra.mxu0 0
    %665 = vmatprep.subr.bf16.mxu0 0
    %666 = vmatpush1.bf16.msra.mxu0 0
    %667 = vmatprep.mubr.bf16.mxu0 0
    %668 = vmatmul.mubr.bf16.gmra.mrb[0].mxu0 %v633
    %v669 = vpop.f32.mrb[0].mxu0
    %v670 = vadd.f32 0.0, %v669
    %v671 = vpop.f32.mrb[0].mxu0
    %v672 = vpop.f32.mrb[0].mxu0
    %v673 = vpop.f32.mrb[0].mxu0
    %674 = vdwg.mxu0
    %v676 = vrot.slane %v670, 4
    %v678 = vadd.f32 %v142, %v676
    %v679 = vxor.u32 %v678, 2147483648
    %v680 = vmul.f32 %v679, 1.442695
    %v681 = vpow.pop %v680
    %v682 = vadd.f32 %v681, 1.0
    %v683 = vrcp.pop %v682
    %v684 = vmul.f32 1.0, %v683
    %v685 = vtanh.pop %v678
    %v687 = vrot.slane %v620, 6
    %v689 = vmul.f32 %v684, %v687
    %691 = vrot.lane.b32.xlu0 %v685, 64
    %v692 = vpop.permute.xlu0 %691
    %v694 = vmul.f32 %v684, %v692
    %696 = vrot.lane.b32.xlu0 %v694, 32
    %v697 = vpop.permute.xlu0 %696
    %v699 = vadd.f32 %v689, %v697
    %v700 = vtanh.pop %v699
    %702 = vrot.lane.b32.xlu0 %v700, 64
    %v703 = vpop.permute.xlu0 %702
    %v705 = vmul.f32 %v684, %v703
    %v706 = vpack.c.bf16 %v705, %v705
    %v708 = vrot.slane %v706, 2
    %709 = vrot.lane.b32.xlu0 %v708, 32
    %v710 = vpop.permute.xlu0 %709
    %v712 = vsel %vm164, %v710, 0
    %714 = vmatprep.subr.bf16.mxu0 0
    %715 = vmatpush1.bf16.msra.mxu0 %v160
    %716 = vmatprep.subr.bf16.mxu0 0
    %717 = vmatpush1.bf16.msra.mxu0 %v161
    %718 = vmatprep.subr.bf16.mxu0 0
    %719 = vmatpush1.bf16.msra.mxu0 0
    %720 = vmatprep.subr.bf16.mxu0 0
    %721 = vmatpush1.bf16.msra.mxu0 0
    %722 = vmatprep.subr.bf16.mxu0 0
    %723 = vmatpush1.bf16.msra.mxu0 0
    %724 = vmatprep.subr.bf16.mxu0 0
    %725 = vmatpush1.bf16.msra.mxu0 0
    %726 = vmatprep.subr.bf16.mxu0 0
    %727 = vmatpush1.bf16.msra.mxu0 0
    %728 = vmatprep.subr.bf16.mxu0 0
    %729 = vmatpush1.bf16.msra.mxu0 0
    %730 = vmatprep.subr.bf16.mxu0 0
    %731 = vmatpush1.bf16.msra.mxu0 0
    %732 = vmatprep.subr.bf16.mxu0 0
    %733 = vmatpush1.bf16.msra.mxu0 0
    %734 = vmatprep.subr.bf16.mxu0 0
    %735 = vmatpush1.bf16.msra.mxu0 0
    %736 = vmatprep.subr.bf16.mxu0 0
    %737 = vmatpush1.bf16.msra.mxu0 0
    %738 = vmatprep.subr.bf16.mxu0 0
    %739 = vmatpush1.bf16.msra.mxu0 0
    %740 = vmatprep.subr.bf16.mxu0 0
    %741 = vmatpush1.bf16.msra.mxu0 0
    %742 = vmatprep.subr.bf16.mxu0 0
    %743 = vmatpush1.bf16.msra.mxu0 0
    %744 = vmatprep.subr.bf16.mxu0 0
    %745 = vmatpush1.bf16.msra.mxu0 0
    %746 = vmatprep.mubr.bf16.mxu0 0
    %747 = vmatmul.mubr.bf16.gmra.mrb[0].mxu0 %v712
    %v748 = vpop.f32.mrb[0].mxu0
    %v749 = vadd.f32 0.0, %v748
    %v750 = vpop.f32.mrb[0].mxu0
    %v751 = vpop.f32.mrb[0].mxu0
    %v752 = vpop.f32.mrb[0].mxu0
    %753 = vdwg.mxu0
    %v755 = vrot.slane %v749, 2
    %v757 = vadd.f32 %v142, %v755
    %v758 = vxor.u32 %v757, 2147483648
    %v759 = vmul.f32 %v758, 1.442695
    %v760 = vpow.pop %v759
    %v761 = vadd.f32 %v760, 1.0
    %v762 = vrcp.pop %v761
    %v763 = vmul.f32 1.0, %v762
    %v764 = vtanh.pop %v757
    %v766 = vrot.slane %v699, 6
    %v768 = vmul.f32 %v763, %v766
    %770 = vrot.lane.b32.xlu0 %v764, 64
    %v771 = vpop.permute.xlu0 %770
    %v773 = vmul.f32 %v763, %v771
    %775 = vrot.lane.b32.xlu0 %v773, 32
    %v776 = vpop.permute.xlu0 %775
    %v778 = vadd.f32 %v768, %v776
    %v779 = vtanh.pop %v778
    %781 = vrot.lane.b32.xlu0 %v779, 64
    %v782 = vpop.permute.xlu0 %781
    %v784 = vmul.f32 %v763, %v782
    %786 = vrot.lane.b32.xlu0 %v784, 32
    %v787 = vpop.permute.xlu0 %786
    %vm789 = vcmask 261126
    %790 = vst.msk [vmem:[%s13 - $0x6] sm:$0xc0] %vm789, %v787
    %792 = vrot.lane.b32.xlu0 %v778, 96
    %v793 = vpop.permute.xlu0 %792
    %795 = vst.msk [vmem:[%s14 - $0x6] sm:$0xc0] %vm789, %v793
    %v796 = vpack.c.bf16 %v784, %v784
    %v797 = vld [vmem:[%s7] sm:$0xf]
    %v798 = vld [vmem:[%s7 + $0x4] sm:$0xf]
    %v799 = vld [vmem:[%s7 + $0x8] sm:$0xf]
    %v800 = vld [vmem:[%s7 + $0xc] sm:$0xf]
    %v801 = vld [vmem:[%s8] sm:$0x1]
    %v803 = vlaneseq
    %v804 = vshrl.u32 %v803, 7
    %v805 = vsub.s32 0, %v804
    %v806 = vrot.slane %v801, %v805
    %v809 = vrot.slane %v796, 3
    %810 = vrot.lane.b32.xlu0 %v809, 32
    %v811 = vpop.permute.xlu0 %810
    %v816 = vunpack.c.l.b16 %v797
    %v817 = vunpack.c.l.b16 %v798
    %v818 = vunpack.c.l.b16 %v799
    %v819 = vunpack.c.l.b16 %v800
    %v820 = vpack.c.b16 %v817, %v816
    %v821 = vpack.c.b16 %v819, %v818
    %v825 = vsel %vm164, %v811, 0
    %827 = vmatprep.subr.bf16.mxu0 0
    %828 = vmatpush1.bf16.msra.mxu0 %v820
    %829 = vmatprep.subr.bf16.mxu0 0
    %830 = vmatpush1.bf16.msra.mxu0 %v821
    %831 = vmatprep.subr.bf16.mxu0 0
    %832 = vmatpush1.bf16.msra.mxu0 0
    %833 = vmatprep.subr.bf16.mxu0 0
    %834 = vmatpush1.bf16.msra.mxu0 0
    %835 = vmatprep.subr.bf16.mxu0 0
    %836 = vmatpush1.bf16.msra.mxu0 0
    %837 = vmatprep.subr.bf16.mxu0 0
    %838 = vmatpush1.bf16.msra.mxu0 0
    %839 = vmatprep.subr.bf16.mxu0 0
    %840 = vmatpush1.bf16.msra.mxu0 0
    %841 = vmatprep.subr.bf16.mxu0 0
    %842 = vmatpush1.bf16.msra.mxu0 0
    %843 = vmatprep.subr.bf16.mxu0 0
    %844 = vmatpush1.bf16.msra.mxu0 0
    %845 = vmatprep.subr.bf16.mxu0 0
    %846 = vmatpush1.bf16.msra.mxu0 0
    %847 = vmatprep.subr.bf16.mxu0 0
    %848 = vmatpush1.bf16.msra.mxu0 0
    %849 = vmatprep.subr.bf16.mxu0 0
    %850 = vmatpush1.bf16.msra.mxu0 0
    %851 = vmatprep.subr.bf16.mxu0 0
    %852 = vmatpush1.bf16.msra.mxu0 0
    %853 = vmatprep.subr.bf16.mxu0 0
    %854 = vmatpush1.bf16.msra.mxu0 0
    %855 = vmatprep.subr.bf16.mxu0 0
    %856 = vmatpush1.bf16.msra.mxu0 0
    %857 = vmatprep.subr.bf16.mxu0 0
    %858 = vmatpush1.bf16.msra.mxu0 0
    %859 = vmatprep.mubr.bf16.mxu0 0
    %860 = vmatmul.mubr.bf16.gmra.mrb[0].mxu0 %v825
    %v861 = vpop.f32.mrb[0].mxu0
    %v862 = vadd.f32 %v806, %v861
    %v863 = vpop.f32.mrb[0].mxu0
    %v864 = vpop.f32.mrb[0].mxu0
    %v865 = vpop.f32.mrb[0].mxu0
    %866 = vdwg.mxu0
    %v867 = vpack.c.bf16 %v862, %v862
    %v868 = vld [vmem:[%s9] sm:$0xf]
    %v869 = vld [vmem:[%s9 + $0x4] sm:$0xf]
    %v870 = vld [vmem:[%s9 + $0x8] sm:$0xf]
    %v871 = vld [vmem:[%s9 + $0xc] sm:$0xf]
    %v872 = vld [vmem:[%s11] sm:$0x1]
    %v874 = vlaneseq
    %v875 = vshrl.u32 %v874, 7
    %v876 = vsub.s32 0, %v875
    %v877 = vrot.slane %v872, %v876
    %v883 = vunpack.c.l.b16 %v868
    %v884 = vunpack.c.l.b16 %v869
    %v885 = vunpack.c.l.b16 %v870
    %v886 = vunpack.c.l.b16 %v871
    %v887 = vpack.c.b16 %v884, %v883
    %v888 = vpack.c.b16 %v886, %v885
    %v892 = vsel %vm164, %v867, 0
    %894 = vmatprep.subr.bf16.mxu0 0
    %895 = vmatpush1.bf16.msra.mxu0 %v887
    %896 = vmatprep.subr.bf16.mxu0 0
    %897 = vmatpush1.bf16.msra.mxu0 %v888
    %898 = vmatprep.subr.bf16.mxu0 0
    %899 = vmatpush1.bf16.msra.mxu0 0
    %900 = vmatprep.subr.bf16.mxu0 0
    %901 = vmatpush1.bf16.msra.mxu0 0
    %902 = vmatprep.subr.bf16.mxu0 0
    %903 = vmatpush1.bf16.msra.mxu0 0
    %904 = vmatprep.subr.bf16.mxu0 0
    %905 = vmatpush1.bf16.msra.mxu0 0
    %906 = vmatprep.subr.bf16.mxu0 0
    %907 = vmatpush1.bf16.msra.mxu0 0
    %908 = vmatprep.subr.bf16.mxu0 0
    %909 = vmatpush1.bf16.msra.mxu0 0
    %910 = vmatprep.subr.bf16.mxu0 0
    %911 = vmatpush1.bf16.msra.mxu0 0
    %912 = vmatprep.subr.bf16.mxu0 0
    %913 = vmatpush1.bf16.msra.mxu0 0
    %914 = vmatprep.subr.bf16.mxu0 0
    %915 = vmatpush1.bf16.msra.mxu0 0
    %916 = vmatprep.subr.bf16.mxu0 0
    %917 = vmatpush1.bf16.msra.mxu0 0
    %918 = vmatprep.subr.bf16.mxu0 0
    %919 = vmatpush1.bf16.msra.mxu0 0
    %920 = vmatprep.subr.bf16.mxu0 0
    %921 = vmatpush1.bf16.msra.mxu0 0
    %922 = vmatprep.subr.bf16.mxu0 0
    %923 = vmatpush1.bf16.msra.mxu0 0
    %924 = vmatprep.subr.bf16.mxu0 0
    %925 = vmatpush1.bf16.msra.mxu0 0
    %926 = vmatprep.mubr.bf16.mxu0 0
    %927 = vmatmul.mubr.bf16.gmra.mrb[0].mxu0 %v892
    %v928 = vpop.f32.mrb[0].mxu0
    %v929 = vadd.f32 %v877, %v928
    %v930 = vpop.f32.mrb[0].mxu0
    %v931 = vpop.f32.mrb[0].mxu0
    %v932 = vpop.f32.mrb[0].mxu0
    %933 = vdwg.mxu0
    %v934 = vld [vmem:[%s4] sm:$0x3]
    %v935 = vld [vmem:[%s10] sm:$0xf]
    %937 = vset.pattern.permute.xlu0 0
    %938 = vperm.xlu0 %937, %v934
    %v939 = vpop.permute.xlu0 %938
    %v941 = vlaneseq
    %v942 = vshrl.u32 %v941, 7
    %v943 = vsub.s32 0, %v942
    %v944 = vrot.slane %v935, %v943
    %v945 = vmul.f32 %v939, %v944
    %v946 = vadd.f32 %v929, %v945
    %947 = vset.pattern.permute.xlu0 1
    %948 = vperm.xlu0 %947, %v934
    %v949 = vpop.permute.xlu0 %948
    %v951 = vlaneseq
    %v952 = vshrl.u32 %v951, 7
    %v953 = vsub.s32 1, %v952
    %v954 = vrot.slane %v935, %v953
    %v955 = vmul.f32 %v949, %v954
    %v956 = vadd.f32 %v946, %v955
    %957 = vset.pattern.permute.xlu0 2
    %958 = vperm.xlu0 %957, %v934
    %v959 = vpop.permute.xlu0 %958
    %v961 = vlaneseq
    %v962 = vshrl.u32 %v961, 7
    %v963 = vsub.s32 2, %v962
    %v964 = vrot.slane %v935, %v963
    %v965 = vmul.f32 %v959, %v964
    %v966 = vadd.f32 %v956, %v965
    %967 = vset.pattern.permute.xlu0 3
    %968 = vperm.xlu0 %967, %v934
    %v969 = vpop.permute.xlu0 %968
    %v971 = vlaneseq
    %v972 = vshrl.u32 %v971, 7
    %v973 = vsub.s32 3, %v972
    %v974 = vrot.slane %v935, %v973
    %v975 = vmul.f32 %v969, %v974
    %v976 = vadd.f32 %v966, %v975
    %vm977 = vcmask 58368
    %v978 = vsel %vm977, %v976, -inf
    %979 = vmax.xlane.f32.xlu0 %v978
    %v980 = vpop.xlane.xlu0 %979
    %v981 = vsub.f32 %v976, %v980
    %v982 = vmul.f32 %v981, 1.442695
    %v983 = vpow.pop %v982
    %v984 = vsel %vm977, %v983, 0.0
    %985 = vadd.xlane.f32.xlu0 %v984
    %v986 = vpop.xlane.xlu0 %985
    %v987 = vlog2.pop %v986
    %v988 = vmul.f32 %v987, 0.6931472
    %v989 = vadd.f32 %v980, %v988
    %v990 = vsub.f32 %v976, %v989
    %991 = vst.msk [vmem:[#allocation2] sm:$0x3] %vm977, %v990
    // Predicated region
    $region50: #{lstm_text_classifier_forward.1} parent=1 // pred_check
      _
    $region51: #{lstm_text_classifier_forward.1} parent=1 // pred_check_branch
      %993 = sbr.rel (0) target = $region53
    $region52: #{lstm_text_classifier_forward.1} parent=1 // pred_region
      %s995 = ssub.s32 32, 32
      %996 = vsyncadd [#allocation3], %s995
      %s998 = sshll.u32 [#allocation2], 4
      %s999 = int_to_ptr.vmem [resolvable:$true] %s998
      %1001 = dma.vmem_to_hbm [thread:$0]  %s999, 32, %s12, [#allocation3]
    $region53: #{lstm_text_classifier_forward.1} parent=1 // pred_fallthru
      _
    // Predicated region
    $region54: #{lstm_text_classifier_forward.1} parent=1 // pred_check
      _
    $region55: #{lstm_text_classifier_forward.1} parent=1 // pred_check_branch
      %1003 = sbr.rel (0) target = $region57
    $region56: #{lstm_text_classifier_forward.1} parent=1 // pred_region
      _
    $region57: #{lstm_text_classifier_forward.1} parent=1 // pred_fallthru
      _
    // Predicated region
    $region58: #{lstm_text_classifier_forward.1} parent=1 // pred_check
      _
    $region59: #{lstm_text_classifier_forward.1} parent=1 // pred_check_branch
      %1005 = sbr.rel (0) target = $region61
    $region60: #{lstm_text_classifier_forward.1} parent=1 // pred_region
      _
    $region61: #{lstm_text_classifier_forward.1} parent=1 // pred_fallthru
      _
    // Predicated region
    $region62: #{lstm_text_classifier_forward.1} parent=1 // pred_check
      _
    $region63: #{lstm_text_classifier_forward.1} parent=1 // pred_check_branch
      %1007 = sbr.rel (0) target = $region65
    $region64: #{lstm_text_classifier_forward.1} parent=1 // pred_region
      %1008 = dma.done [#allocation3], 32
    $region65: #{lstm_text_classifier_forward.1} parent=1 // pred_fallthru
      _
    // Predicated region
    $region66: #{lstm_text_classifier_forward.1} parent=1 // pred_check
      _
    $region67: #{lstm_text_classifier_forward.1} parent=1 // pred_check_branch
      %1010 = sbr.rel (0) target = $region69
    $region68: #{lstm_text_classifier_forward.1} parent=1 // pred_region
      _
    $region69: #{lstm_text_classifier_forward.1} parent=1 // pred_fallthru
      _
    // Predicated region
    $region70: #{lstm_text_classifier_forward.1} parent=1 // pred_check
      _
    $region71: #{lstm_text_classifier_forward.1} parent=1 // pred_check_branch
      %1012 = sbr.rel (0) target = $region73
    $region72: #{lstm_text_classifier_forward.1} parent=1 // pred_region
      _
    $region73: #{lstm_text_classifier_forward.1} parent=1 // pred_fallthru
      _
    %1013 = vsyncpa [#allocation3], 1

</llo_original>
